<compile_context>
chip_gen: v7x
topology: tpu7x:2x2x1
jax: 0.10.0
libtpu: 0.0.40
codegen_flags: <defaults>
</compile_context>

<pallas_src>
import functools

import jax
import jax.numpy as jnp
from jax.experimental import pallas as pl
from jax.experimental.pallas import tpu as pltpu


# ----------------------------- Pallas kernel --------------------------------
def downblock_kernel(z_ref, w_ref, o_ref, *, eps, slope):
    # z_ref: (1, Hz, 2, Wz, C2)  padded, H/W-folded NHWC input (one batch elem)
    #        z_ref[0, hz, r, wz, c*Cin + ci] == x_pad[2*hz + r, 2*wz + c, ci]
    # w_ref: (8, Cout, C2)       per-tap conv weight, tap = 2*kh + kw//2,
    #                            channel j = (kw % 2)*Cin + ci
    # o_ref: (1, Cout, Ho*Wo)    lane-dense output tile (already NCHW order)
    _, Hz, _, Wz, C2 = z_ref.shape
    Ho, Wo = Hz - 1, Wz - 1
    M = Ho * Wo
    Cout = w_ref.shape[1]

    # 4x4 stride-2 conv as 8 accumulated per-tap MXU matmuls, read straight
    # from the input ref (no im2col scratch).  f32 accumulation.
    acc = jnp.zeros((Cout, M), jnp.float32)
    for kh in range(4):                      # conv kernel row
        a, r = kh // 2, kh % 2               # folded-row offset, row parity
        for t in range(2):                   # folded W tap (covers kw = 2t, 2t+1)
            slab = z_ref[0, a:a + Ho, r, t:t + Wo, :]        # (Ho, Wo, C2)
            w_tap = w_ref[2 * kh + t]                        # (Cout, C2)
            acc = acc + jax.lax.dot_general(
                w_tap, slab.reshape(M, C2),
                dimension_numbers=(((1,), (1,)), ((), ())),
                preferred_element_type=jnp.float32)          # (Cout, M)

    # InstanceNorm2d (affine=False, biased variance), two-pass for stability.
    # Note: the conv bias is intentionally omitted upstream - it cancels here.
    inv_m = 1.0 / M
    mean = jnp.sum(acc, axis=-1, keepdims=True) * inv_m
    cen = acc - mean
    var = jnp.sum(cen * cen, axis=-1, keepdims=True) * inv_m
    yn = cen * jax.lax.rsqrt(var + eps)

    # LeakyReLU(0.2)
    o_ref[0] = jnp.where(yn > 0, yn, slope * yn).astype(o_ref.dtype)


# ------------------------------- wrapper -------------------------------------
def down_block(x_nchw, w_oihw, bias=None, *, eps=1e-5, slope=0.2,
               matmul_dtype=jnp.bfloat16):
    """DownBlock forward. x: (N, Cin, H, W) -> (N, Cout, H//2, W//2).

    `bias` is accepted for API parity with nn.Conv2d but is mathematically
    cancelled by the non-affine InstanceNorm2d, so it never enters the kernel.
    """
    del bias
    N, Cin, H, W = x_nchw.shape
    Cout = w_oihw.shape[0]
    assert H % 2 == 0 and W % 2 == 0
    Hp, Wp = H + 2, W + 2
    Hz, Wz = Hp // 2, Wp // 2
    Ho, Wo = H // 2, W // 2
    C2 = 2 * Cin
    K = 16 * Cin
    M = Ho * Wo

    # NCHW -> NHWC (+ cast to matmul dtype) + pad-by-1: one fused copy pass.
    # The H/W space-to-depth folds below are free leading-dim reshapes.
    x = jnp.transpose(x_nchw, (0, 2, 3, 1)).astype(matmul_dtype)
    xp = jnp.pad(x, ((0, 0), (1, 1), (1, 1), (0, 0)))
    z5 = xp.reshape(N, Hz, 2, Wz, C2)

    # (Cout, Cin, 4, 4) -> (8, Cout, 2*Cin): tap = 2*kh + kw//2, j = (kw%2)*Cin+ci.
    w_taps = (jnp.transpose(w_oihw, (0, 2, 3, 1))        # (Cout, 4, 4, Cin)
              .reshape(Cout, 8, C2)
              .transpose(1, 0, 2)
              .astype(matmul_dtype))                     # (8, Cout, C2)

    # Generation-aware VMEM budget (double-buffered in/out blocks + resident
    # weight + f32 accumulator); cap at 75% of physical VMEM.
    isz = jnp.dtype(matmul_dtype).itemsize
    in_blk = Hz * 2 * Wz * C2 * isz
    out_blk = Cout * M * 4
    w_bytes = 8 * Cout * C2 * isz
    need = 2 * in_blk + 2 * out_blk + 2 * w_bytes + Cout * M * 4 + 2 * M * C2 * isz
    try:
        phys = getattr(pltpu.get_tpu_info(), "vmem_capacity_bytes", None) or (64 << 20)
    except Exception:  # pragma: no cover - conservative fallback off-TPU
        phys = 64 << 20
    vmem_limit = int(min((phys * 3) // 4, max(32 << 20, 2 * need)))

    cost = pl.CostEstimate(
        flops=int(2 * N * Cout * M * K + 6 * N * Cout * M),
        transcendentals=int(N * Cout),
        bytes_accessed=int(N * in_blk + w_bytes + N * out_blk))

    kernel = functools.partial(downblock_kernel, eps=eps, slope=slope)
    out_flat = pl.pallas_call(
        kernel,
        out_shape=jax.ShapeDtypeStruct((N, Cout, M), jnp.float32),
        grid=(N,),
        in_specs=[
            pl.BlockSpec((1, Hz, 2, Wz, C2), lambda n: (n, 0, 0, 0, 0)),
            pl.BlockSpec((8, Cout, C2), lambda n: (0, 0, 0)),
        ],
        out_specs=pl.BlockSpec((1, Cout, M), lambda n: (n, 0, 0)),
        compiler_params=pltpu.CompilerParams(
            dimension_semantics=("parallel",),
            vmem_limit_bytes=vmem_limit),
        cost_estimate=cost,
    )(z5, w_taps)

    # Output is already (N, Cout, Ho*Wo) in NCHW order; this reshape is free.
    return out_flat.reshape(N, Cout, Ho, Wo)


# ----------------------- parameter construction (glue) -----------------------
def spectral_normalize(w_oihw, key, n_iters=30, eps=1e-12):
    """Replicates torch spectral_norm (eval): W / sigma_max(W.reshape(Cout, -1))."""
    Cout = w_oihw.shape[0]
    w_mat = w_oihw.reshape(Cout, -1)
    u = jax.random.normal(key, (Cout,), jnp.float32)
    u = u / (jnp.linalg.norm(u) + eps)
    for _ in range(n_iters):
        v = w_mat.T @ u
        v = v / (jnp.linalg.norm(v) + eps)
        u = w_mat @ v
        u = u / (jnp.linalg.norm(u) + eps)
    sigma = u @ (w_mat @ v)
    return w_oihw / sigma


def instance_norm_ref(y, eps=1e-5):
    mean = jnp.mean(y, axis=(2, 3), keepdims=True)
    var = jnp.mean((y - mean) ** 2, axis=(2, 3), keepdims=True)
    return (y - mean) / jnp.sqrt(var + eps)


# --------------------------------- main ---------------------------------------
if __name__ == "__main__":
    key = jax.random.PRNGKey(0)
    k_x, k_w, k_b, k_u = jax.random.split(key, 4)

    N, Cin, H, W = 2, 4, 16, 16
    Cout = 8

    x = jax.random.normal(k_x, (N, Cin, H, W), jnp.float32)
    w_raw = 0.1 * jax.random.normal(k_w, (Cout, Cin, 4, 4), jnp.float32)
    bias = 0.1 * jax.random.normal(k_b, (Cout,), jnp.float32)

    # spectral_norm wrapper on the conv weight (power iteration, deterministic).
    w_sn = spectral_normalize(w_raw, k_u)

    # pure-JAX reference: conv (with bias) -> InstanceNorm2d -> LeakyReLU(0.2).
    y_ref = jax.lax.conv_general_dilated(
        x, w_sn, window_strides=(2, 2), padding=((1, 1), (1, 1)),
        dimension_numbers=("NCHW", "OIHW", "NCHW"))
    y_ref = y_ref + bias[None, :, None, None]
    y_ref = instance_norm_ref(y_ref)
    y_ref = jnp.where(y_ref > 0, y_ref, 0.2 * y_ref)

    # f32 matmul path: tight tolerance.
    out_f32 = jax.block_until_ready(
        down_block(x, w_sn, bias, matmul_dtype=jnp.float32))
    assert out_f32.shape == (N, Cout, H // 2, W // 2)
    assert jnp.allclose(out_f32, y_ref, atol=5e-4, rtol=5e-4)

    # default bf16 matmul path (f32 accumulation): looser tolerance.
    out_bf16 = jax.block_until_ready(down_block(x, w_sn, bias))
    assert out_bf16.shape == (N, Cout, H // 2, W // 2)
    assert jnp.allclose(out_bf16, y_ref, atol=3e-2, rtol=3e-2)

    print("KERNEL_OK")
</pallas_src>

<mosaic_0001>
module attributes {stable_mosaic.version = 11 : i64} {
  func.func @downblock_kernel(%arg0: i32, %arg1: memref<1x9x2x9x8xf32, #tpu.memory_space<vmem>>, %arg2: memref<8x8x8xf32, #tpu.memory_space<vmem>>, %arg3: memref<1x8x64xf32, #tpu.memory_space<vmem>>) attributes {dimension_semantics = [#tpu.dimension_semantics<parallel>], iteration_bounds = array<i64: 2>, scalar_prefetch = 0 : i64, scratch_operands = 0 : i64, tpu.core_type = #tpu.core_type<tc>, window_params = [{transform_indices = @transform_0, window_bounds = array<i64: 1, 9, 2, 9, 8>}, {pipeline_mode = #tpu.pipeline_mode<synchronous>, transform_indices = @transform_1, window_bounds = array<i64: 8, 8, 8>}, {transform_indices = @transform_2, window_bounds = array<i64: 1, 8, 64>}]} {
    %cst = arith.constant 0.000000e+00 : f32
    %0 = vector.broadcast %cst : f32 to vector<8x64xf32>
    %c0 = arith.constant 0 : index
    %c0_0 = arith.constant 0 : index
    %c0_1 = arith.constant 0 : index
    %c0_2 = arith.constant 0 : index
    %c0_3 = arith.constant 0 : index
    %1 = vector.load %arg1[%c0, %c0_0, %c0_1, %c0_2, %c0_3] : memref<1x9x2x9x8xf32, #tpu.memory_space<vmem>>, vector<1x8x1x8x8xf32>
    %2 = vector.shape_cast %1 : vector<1x8x1x8x8xf32> to vector<8x8x8xf32>
    %c0_4 = arith.constant 0 : index
    %c0_5 = arith.constant 0 : index
    %c0_6 = arith.constant 0 : index
    %3 = vector.load %arg2[%c0_4, %c0_5, %c0_6] : memref<8x8x8xf32, #tpu.memory_space<vmem>>, vector<1x8x8xf32>
    %4 = vector.shape_cast %3 : vector<1x8x8xf32> to vector<8x8xf32>
    %5 = vector.shape_cast %2 : vector<8x8x8xf32> to vector<64x8xf32>
    %cst_7 = arith.constant dense<0.000000e+00> : vector<8x64xf32>
    %6 = tpu.matmul %4, %5, %cst_7 {dimension_numbers = #tpu.dot_dimension_numbers<[1], [1], [0], [0], [0, 0, 1, 0], [], []>} : vector<8x8xf32>, vector<64x8xf32>, vector<8x64xf32> -> vector<8x64xf32>
    %7 = arith.addf %0, %6 : vector<8x64xf32>
    %c0_8 = arith.constant 0 : index
    %c0_9 = arith.constant 0 : index
    %c0_10 = arith.constant 0 : index
    %c1 = arith.constant 1 : index
    %c0_11 = arith.constant 0 : index
    %8 = vector.load %arg1[%c0_8, %c0_9, %c0_10, %c1, %c0_11] : memref<1x9x2x9x8xf32, #tpu.memory_space<vmem>>, vector<1x8x1x8x8xf32>
    %9 = vector.shape_cast %8 : vector<1x8x1x8x8xf32> to vector<8x8x8xf32>
    %c1_12 = arith.constant 1 : index
    %c0_13 = arith.constant 0 : index
    %c0_14 = arith.constant 0 : index
    %10 = vector.load %arg2[%c1_12, %c0_13, %c0_14] : memref<8x8x8xf32, #tpu.memory_space<vmem>>, vector<1x8x8xf32>
    %11 = vector.shape_cast %10 : vector<1x8x8xf32> to vector<8x8xf32>
    %12 = vector.shape_cast %9 : vector<8x8x8xf32> to vector<64x8xf32>
    %cst_15 = arith.constant dense<0.000000e+00> : vector<8x64xf32>
    %13 = tpu.matmul %11, %12, %cst_15 {dimension_numbers = #tpu.dot_dimension_numbers<[1], [1], [0], [0], [0, 0, 1, 0], [], []>} : vector<8x8xf32>, vector<64x8xf32>, vector<8x64xf32> -> vector<8x64xf32>
    %14 = arith.addf %7, %13 : vector<8x64xf32>
    %c0_16 = arith.constant 0 : index
    %c0_17 = arith.constant 0 : index
    %c1_18 = arith.constant 1 : index
    %c0_19 = arith.constant 0 : index
    %c0_20 = arith.constant 0 : index
    %15 = vector.load %arg1[%c0_16, %c0_17, %c1_18, %c0_19, %c0_20] : memref<1x9x2x9x8xf32, #tpu.memory_space<vmem>>, vector<1x8x1x8x8xf32>
    %16 = vector.shape_cast %15 : vector<1x8x1x8x8xf32> to vector<8x8x8xf32>
    %c2 = arith.constant 2 : index
    %c0_21 = arith.constant 0 : index
    %c0_22 = arith.constant 0 : index
    %17 = vector.load %arg2[%c2, %c0_21, %c0_22] : memref<8x8x8xf32, #tpu.memory_space<vmem>>, vector<1x8x8xf32>
    %18 = vector.shape_cast %17 : vector<1x8x8xf32> to vector<8x8xf32>
    %19 = vector.shape_cast %16 : vector<8x8x8xf32> to vector<64x8xf32>
    %cst_23 = arith.constant dense<0.000000e+00> : vector<8x64xf32>
    %20 = tpu.matmul %18, %19, %cst_23 {dimension_numbers = #tpu.dot_dimension_numbers<[1], [1], [0], [0], [0, 0, 1, 0], [], []>} : vector<8x8xf32>, vector<64x8xf32>, vector<8x64xf32> -> vector<8x64xf32>
    %21 = arith.addf %14, %20 : vector<8x64xf32>
    %c0_24 = arith.constant 0 : index
    %c0_25 = arith.constant 0 : index
    %c1_26 = arith.constant 1 : index
    %c1_27 = arith.constant 1 : index
    %c0_28 = arith.constant 0 : index
    %22 = vector.load %arg1[%c0_24, %c0_25, %c1_26, %c1_27, %c0_28] : memref<1x9x2x9x8xf32, #tpu.memory_space<vmem>>, vector<1x8x1x8x8xf32>
    %23 = vector.shape_cast %22 : vector<1x8x1x8x8xf32> to vector<8x8x8xf32>
    %c3 = arith.constant 3 : index
    %c0_29 = arith.constant 0 : index
    %c0_30 = arith.constant 0 : index
    %24 = vector.load %arg2[%c3, %c0_29, %c0_30] : memref<8x8x8xf32, #tpu.memory_space<vmem>>, vector<1x8x8xf32>
    %25 = vector.shape_cast %24 : vector<1x8x8xf32> to vector<8x8xf32>
    %26 = vector.shape_cast %23 : vector<8x8x8xf32> to vector<64x8xf32>
    %cst_31 = arith.constant dense<0.000000e+00> : vector<8x64xf32>
    %27 = tpu.matmul %25, %26, %cst_31 {dimension_numbers = #tpu.dot_dimension_numbers<[1], [1], [0], [0], [0, 0, 1, 0], [], []>} : vector<8x8xf32>, vector<64x8xf32>, vector<8x64xf32> -> vector<8x64xf32>
    %28 = arith.addf %21, %27 : vector<8x64xf32>
    %c0_32 = arith.constant 0 : index
    %c1_33 = arith.constant 1 : index
    %c0_34 = arith.constant 0 : index
    %c0_35 = arith.constant 0 : index
    %c0_36 = arith.constant 0 : index
    %29 = vector.load %arg1[%c0_32, %c1_33, %c0_34, %c0_35, %c0_36] : memref<1x9x2x9x8xf32, #tpu.memory_space<vmem>>, vector<1x8x1x8x8xf32>
    %30 = vector.shape_cast %29 : vector<1x8x1x8x8xf32> to vector<8x8x8xf32>
    %c4 = arith.constant 4 : index
    %c0_37 = arith.constant 0 : index
    %c0_38 = arith.constant 0 : index
    %31 = vector.load %arg2[%c4, %c0_37, %c0_38] : memref<8x8x8xf32, #tpu.memory_space<vmem>>, vector<1x8x8xf32>
    %32 = vector.shape_cast %31 : vector<1x8x8xf32> to vector<8x8xf32>
    %33 = vector.shape_cast %30 : vector<8x8x8xf32> to vector<64x8xf32>
    %cst_39 = arith.constant dense<0.000000e+00> : vector<8x64xf32>
    %34 = tpu.matmul %32, %33, %cst_39 {dimension_numbers = #tpu.dot_dimension_numbers<[1], [1], [0], [0], [0, 0, 1, 0], [], []>} : vector<8x8xf32>, vector<64x8xf32>, vector<8x64xf32> -> vector<8x64xf32>
    %35 = arith.addf %28, %34 : vector<8x64xf32>
    %c0_40 = arith.constant 0 : index
    %c1_41 = arith.constant 1 : index
    %c0_42 = arith.constant 0 : index
    %c1_43 = arith.constant 1 : index
    %c0_44 = arith.constant 0 : index
    %36 = vector.load %arg1[%c0_40, %c1_41, %c0_42, %c1_43, %c0_44] : memref<1x9x2x9x8xf32, #tpu.memory_space<vmem>>, vector<1x8x1x8x8xf32>
    %37 = vector.shape_cast %36 : vector<1x8x1x8x8xf32> to vector<8x8x8xf32>
    %c5 = arith.constant 5 : index
    %c0_45 = arith.constant 0 : index
    %c0_46 = arith.constant 0 : index
    %38 = vector.load %arg2[%c5, %c0_45, %c0_46] : memref<8x8x8xf32, #tpu.memory_space<vmem>>, vector<1x8x8xf32>
    %39 = vector.shape_cast %38 : vector<1x8x8xf32> to vector<8x8xf32>
    %40 = vector.shape_cast %37 : vector<8x8x8xf32> to vector<64x8xf32>
    %cst_47 = arith.constant dense<0.000000e+00> : vector<8x64xf32>
    %41 = tpu.matmul %39, %40, %cst_47 {dimension_numbers = #tpu.dot_dimension_numbers<[1], [1], [0], [0], [0, 0, 1, 0], [], []>} : vector<8x8xf32>, vector<64x8xf32>, vector<8x64xf32> -> vector<8x64xf32>
    %42 = arith.addf %35, %41 : vector<8x64xf32>
    %c0_48 = arith.constant 0 : index
    %c1_49 = arith.constant 1 : index
    %c1_50 = arith.constant 1 : index
    %c0_51 = arith.constant 0 : index
    %c0_52 = arith.constant 0 : index
    %43 = vector.load %arg1[%c0_48, %c1_49, %c1_50, %c0_51, %c0_52] : memref<1x9x2x9x8xf32, #tpu.memory_space<vmem>>, vector<1x8x1x8x8xf32>
    %44 = vector.shape_cast %43 : vector<1x8x1x8x8xf32> to vector<8x8x8xf32>
    %c6 = arith.constant 6 : index
    %c0_53 = arith.constant 0 : index
    %c0_54 = arith.constant 0 : index
    %45 = vector.load %arg2[%c6, %c0_53, %c0_54] : memref<8x8x8xf32, #tpu.memory_space<vmem>>, vector<1x8x8xf32>
    %46 = vector.shape_cast %45 : vector<1x8x8xf32> to vector<8x8xf32>
    %47 = vector.shape_cast %44 : vector<8x8x8xf32> to vector<64x8xf32>
    %cst_55 = arith.constant dense<0.000000e+00> : vector<8x64xf32>
    %48 = tpu.matmul %46, %47, %cst_55 {dimension_numbers = #tpu.dot_dimension_numbers<[1], [1], [0], [0], [0, 0, 1, 0], [], []>} : vector<8x8xf32>, vector<64x8xf32>, vector<8x64xf32> -> vector<8x64xf32>
    %49 = arith.addf %42, %48 : vector<8x64xf32>
    %c0_56 = arith.constant 0 : index
    %c1_57 = arith.constant 1 : index
    %c1_58 = arith.constant 1 : index
    %c1_59 = arith.constant 1 : index
    %c0_60 = arith.constant 0 : index
    %50 = vector.load %arg1[%c0_56, %c1_57, %c1_58, %c1_59, %c0_60] : memref<1x9x2x9x8xf32, #tpu.memory_space<vmem>>, vector<1x8x1x8x8xf32>
    %51 = vector.shape_cast %50 : vector<1x8x1x8x8xf32> to vector<8x8x8xf32>
    %c7 = arith.constant 7 : index
    %c0_61 = arith.constant 0 : index
    %c0_62 = arith.constant 0 : index
    %52 = vector.load %arg2[%c7, %c0_61, %c0_62] : memref<8x8x8xf32, #tpu.memory_space<vmem>>, vector<1x8x8xf32>
    %53 = vector.shape_cast %52 : vector<1x8x8xf32> to vector<8x8xf32>
    %54 = vector.shape_cast %51 : vector<8x8x8xf32> to vector<64x8xf32>
    %cst_63 = arith.constant dense<0.000000e+00> : vector<8x64xf32>
    %55 = tpu.matmul %53, %54, %cst_63 {dimension_numbers = #tpu.dot_dimension_numbers<[1], [1], [0], [0], [0, 0, 1, 0], [], []>} : vector<8x8xf32>, vector<64x8xf32>, vector<8x64xf32> -> vector<8x64xf32>
    %56 = arith.addf %49, %55 : vector<8x64xf32>
    %cst_64 = arith.constant dense<0.000000e+00> : vector<8xf32>
    %57 = vector.multi_reduction <add>, %56, %cst_64 [1] : vector<8x64xf32> to vector<8xf32>
    %58 = vector.shape_cast %57 : vector<8xf32> to vector<8x1xf32>
    %cst_65 = arith.constant 1.562500e-02 : f32
    %59 = vector.broadcast %cst_65 : f32 to vector<8x1xf32>
    %60 = arith.mulf %58, %59 : vector<8x1xf32>
    %61 = vector.broadcast %60 : vector<8x1xf32> to vector<8x64xf32>
    %62 = arith.subf %56, %61 : vector<8x64xf32>
    %63 = arith.mulf %62, %62 : vector<8x64xf32>
    %cst_66 = arith.constant dense<0.000000e+00> : vector<8xf32>
    %64 = vector.multi_reduction <add>, %63, %cst_66 [1] : vector<8x64xf32> to vector<8xf32>
    %65 = vector.shape_cast %64 : vector<8xf32> to vector<8x1xf32>
    %cst_67 = arith.constant 1.562500e-02 : f32
    %66 = vector.broadcast %cst_67 : f32 to vector<8x1xf32>
    %67 = arith.mulf %65, %66 : vector<8x1xf32>
    %cst_68 = arith.constant 9.99999974E-6 : f32
    %68 = vector.broadcast %cst_68 : f32 to vector<8x1xf32>
    %69 = arith.addf %67, %68 : vector<8x1xf32>
    %70 = math.rsqrt %69 : vector<8x1xf32>
    %71 = vector.broadcast %70 : vector<8x1xf32> to vector<8x64xf32>
    %72 = arith.mulf %62, %71 : vector<8x64xf32>
    %cst_69 = arith.constant 0.000000e+00 : f32
    %73 = vector.broadcast %cst_69 : f32 to vector<8x64xf32>
    %74 = arith.cmpf ogt, %72, %73 : vector<8x64xf32>
    %cst_70 = arith.constant 2.000000e-01 : f32
    %75 = vector.broadcast %cst_70 : f32 to vector<8x64xf32>
    %76 = arith.mulf %75, %72 : vector<8x64xf32>
    %77 = arith.select %74, %72, %76 : vector<8x64xi1>, vector<8x64xf32>
    %c0_71 = arith.constant 0 : index
    %c0_72 = arith.constant 0 : index
    %c0_73 = arith.constant 0 : index
    %78 = vector.load %arg3[%c0_71, %c0_72, %c0_73] : memref<1x8x64xf32, #tpu.memory_space<vmem>>, vector<1x8x64xf32>
    %79 = vector.shape_cast %78 : vector<1x8x64xf32> to vector<8x64xf32>
    %80 = vector.shape_cast %77 : vector<8x64xf32> to vector<1x8x64xf32>
    tpu.vector_store %arg3[%c0_71, %c0_72, %c0_73], %80 {strides = array<i32>} : memref<1x8x64xf32, #tpu.memory_space<vmem>>, vector<1x8x64xf32>,
    return
  }
  func.func @transform_0(%arg0: i32) -> (i32, i32, i32, i32, i32) {
    %c0_i32 = arith.constant 0 : i32
    %c0_i32_0 = arith.constant 0 : i32
    %c0_i32_1 = arith.constant 0 : i32
    %c0_i32_2 = arith.constant 0 : i32
    %c0_i32_3 = arith.constant 0 : i32
    return %arg0, %c0_i32, %c0_i32_0, %c0_i32_1, %c0_i32_2 : i32, i32, i32, i32, i32
  }
  func.func @transform_1(%arg0: i32) -> (i32, i32, i32) {
    %c0_i32 = arith.constant 0 : i32
    %c0_i32_0 = arith.constant 0 : i32
    %c0_i32_1 = arith.constant 0 : i32
    %c0_i32_2 = arith.constant 0 : i32
    return %c0_i32, %c0_i32_0, %c0_i32_1 : i32, i32, i32
  }
  func.func @transform_2(%arg0: i32) -> (i32, i32, i32) {
    %c0_i32 = arith.constant 0 : i32
    %c0_i32_0 = arith.constant 0 : i32
    %c0_i32_1 = arith.constant 0 : i32
    return %arg0, %c0_i32, %c0_i32_0 : i32, i32, i32
  }
}

</mosaic_0001>

<llo_original>
// kernel: tpu_custom_call.1
$region0: #{tpu_custom_call.1}
  #allocation0 [shape = 'u32[]', space=smem, size = 0x4, offset = 0x4, fixed_abs, tag = 'smem constant byte address 0x4 - core index']
  #allocation1 [shape = 'u32[144,128]{1,0:T(1,128)}', space=vmem, size = 0x12000, scoped, tag = 'internal scratch']
  %s0 = inlined_call_operand.vmem [shape: f32[2,9,2,9,8], index: 0, kind: input, shape index: {}]
  %s1 = inlined_call_operand.vmem [shape: f32[8,8,8], index: 1, kind: input, shape index: {}]
  %s2 = inlined_call_operand.hbm [shape: f32[2,8,64], index: 2, kind: output, shape index: {}]
  %s3 = sld [smem:[#allocation0]]
  $region41: #{tpu_custom_call.1} parent=0
    _
  %s5 = ssub.s32 1, %s3
  %s6 = scalar_select 0, %s5, %s3
  $region1: #{tpu_custom_call.1} parent=0
    #allocation2 [shape = 'u8[8192]{0}', space=vmem, size = 0x2000, scoped, tag = 'output window, operand 0']
    #allocation3 [shape = 's32[2]{0}', space=sflag, size = 0x8, scoped, tag = 'scoped memory for tpu_custom_call.1']
    %7 = vsyncpa [#allocation3], 0
    %s8 = scalar_lea.sflag [#allocation3], 1
    %9 = vsyncpa %s8, 0
    loop: start=0, step=1, limit=4
    $region2: #{tpu_custom_call.1} parent=1 // loop_pre_header
      _
    $region3: #{tpu_custom_call.1} parent=1 // loop_header
      %s11 = sphi 0, %s15
      %p12 = scmp.ge.s32.totalorder %s11, 4
      %s21 = sphi 0, %s23
      %s24 = sphi 0, %s21
      %s25 = sphi 0, %s24
      %s41 = sphi 0, %s25
      %s45 = sphi 0, %s45
      %s47 = sphi 0, %s45
      %s48 = sphi 0, %s47
      %s62 = sphi 0, %s48
      %s68 = sphi 0, %s70
      %s71 = sphi 0, %s68
      %s72 = sphi 0, %s71
      %s88 = sphi 0, %s72
    $region4: #{tpu_custom_call.1} parent=1 // loop_header_branch
      %14 = sbr.rel (%p12) target = $region8
    $region5: #{tpu_custom_call.1} parent=1 // loop_body
      %s16 = ssub.s32 %s11, 1
      %s17 = ssub.s32 %s11, 2
      %s18 = sadd.s32 %s11, 1
      %s19 = ssub.s32 %s11, %s18
      %p20 = scmp.eq.s32.totalorder %s19, 0
      %s22 = sadd.s32 %s21, 1
      %s23 = scalar_select %p20, %s21, %s22
      %p26 = pneg %p20
      %p27 = scmp.eq.s32.totalorder %s11, 1
      %p28 = por %p26, %p27
      %p29 = scmp.ne.s32.totalorder %s21, %s24
      %p30 = scmp.eq.s32.totalorder %s11, 0
      %p31 = por %p29, %p30
      %p32 = scmp.ne.s32.totalorder %s21, %s24
      %p33 = scmp.eq.s32.totalorder %s16, 1
      %p34 = por %p32, %p33
      %p35 = scmp.ne.s32.totalorder %s24, %s25
      %p36 = scmp.eq.s32.totalorder %s16, 0
      %p37 = por %p35, %p36
      %p38 = scmp.ne.s32.totalorder %s24, %s25
      %p39 = scmp.eq.s32.totalorder %s17, 1
      %p40 = por %p38, %p39
      %p42 = scmp.ne.s32.totalorder %s25, %s41
      %p43 = scmp.eq.s32.totalorder %s17, 0
      %p44 = por %p42, %p43
      %s46 = sadd.s32 %s45, 1
      %p49 = scmp.eq.s32.totalorder %s11, 1
      %p50 = scmp.ne.s32.totalorder %s45, %s47
      %p51 = scmp.eq.s32.totalorder %s11, 0
      %p52 = por %p50, %p51
      %p53 = scmp.ne.s32.totalorder %s45, %s47
      %p54 = scmp.eq.s32.totalorder %s16, 1
      %p55 = por %p53, %p54
      %p56 = scmp.ne.s32.totalorder %s47, %s48
      %p57 = scmp.eq.s32.totalorder %s16, 0
      %p58 = por %p56, %p57
      %p59 = scmp.ne.s32.totalorder %s47, %s48
      %p60 = scmp.eq.s32.totalorder %s17, 1
      %p61 = por %p59, %p60
      %p63 = scmp.ne.s32.totalorder %s48, %s62
      %p64 = scmp.eq.s32.totalorder %s17, 0
      %p65 = por %p63, %p64
      %s66 = ssub.s32 %s11, %s18
      %p67 = scmp.eq.s32.totalorder %s66, 0
      %s69 = sadd.s32 %s68, 1
      %s70 = scalar_select %p67, %s68, %s69
      %p73 = pneg %p67
      %p74 = scmp.eq.s32.totalorder %s11, 1
      %p75 = por %p73, %p74
      %p76 = scmp.ne.s32.totalorder %s68, %s71
      %p77 = scmp.eq.s32.totalorder %s11, 0
      %p78 = por %p76, %p77
      %p79 = scmp.ne.s32.totalorder %s68, %s71
      %p80 = scmp.eq.s32.totalorder %s16, 1
      %p81 = por %p79, %p80
      %p82 = scmp.ne.s32.totalorder %s71, %s72
      %p83 = scmp.eq.s32.totalorder %s16, 0
      %p84 = por %p82, %p83
      %p85 = scmp.ne.s32.totalorder %s71, %s72
      %p86 = scmp.eq.s32.totalorder %s17, 1
      %p87 = por %p85, %p86
      %p89 = scmp.ne.s32.totalorder %s72, %s88
      %p90 = scmp.eq.s32.totalorder %s17, 0
      %p91 = por %p89, %p90
      %p92 = scmp.le.s32.totalorder 1, %s11
      %p93 = scmp.lt.s32.totalorder %s11, 3
      %p94 = pnand %p92, %p93
      %p95 = pneg %p94
      // Predicated region
      $region9: #{tpu_custom_call.1} parent=5 // pred_check
        _
      $region10: #{tpu_custom_call.1} parent=5 // pred_check_branch
        %97 = sbr.rel (%p94) target = $region12
      $region11: #{tpu_custom_call.1} parent=5 // pred_region
        %s98 = ssub.s32 %s11, 1
        // Predicated region
        $region13: #{tpu_custom_call.1} parent=11 // pred_check
          %p99 = pneg %p58
        $region14: #{tpu_custom_call.1} parent=11 // pred_check_branch
          %101 = sbr.rel (%p99) target = $region16
        $region15: #{tpu_custom_call.1} parent=11 // pred_region
          _
        $region16: #{tpu_custom_call.1} parent=11 // pred_fallthru
          _
      $region12: #{tpu_custom_call.1} parent=5 // pred_fallthru
        _
      %p102 = scmp.lt.s32.totalorder %s11, 2
      // Predicated region
      $region17: #{tpu_custom_call.1} parent=5 // pred_check
        %p103 = pneg %p102
      $region18: #{tpu_custom_call.1} parent=5 // pred_check_branch
        %105 = sbr.rel (%p103) target = $region20
      $region19: #{tpu_custom_call.1} parent=5 // pred_region
        // Predicated region
        $region21: #{tpu_custom_call.1} parent=19 // pred_check
          %p106 = pneg %p31
        $region22: #{tpu_custom_call.1} parent=19 // pred_check_branch
          %108 = sbr.rel (%p106) target = $region24
        $region23: #{tpu_custom_call.1} parent=19 // pred_region
          %p109 = scmp.lt.s32.totalorder %s11, 1
          %s110 = scalar_select %p109, %s11, 1
          %s111 = smul.addr %s110, 36
          %s112 = smul.addr %s111, 8
          %s113 = scalar_lea.vmem %s0, %s112
        $region24: #{tpu_custom_call.1} parent=19 // pred_fallthru
          _
      $region20: #{tpu_custom_call.1} parent=5 // pred_fallthru
        _
      %p114 = scmp.le.s32.totalorder 1, %s11
      %p115 = scmp.lt.s32.totalorder %s11, 3
      %p116 = pnand %p114, %p115
      %p117 = pneg %p116
      // Predicated region
      $region25: #{tpu_custom_call.1} parent=5 // pred_check
        _
      $region26: #{tpu_custom_call.1} parent=5 // pred_check_branch
        %119 = sbr.rel (%p116) target = $region28
      $region27: #{tpu_custom_call.1} parent=5 // pred_region
        %s120 = ssub.s32 %s11, 1
        %p121 = scmp.lt.s32.totalorder %s16, 1
        %s122 = scalar_select %p121, %s16, 1
        %s123 = smul.addr %s122, 36
        %s124 = smul.addr %s123, 8
        %s125 = scalar_lea.vmem %s0, %s124
        %p126 = pneg %p37
        %p127 = pneg %p34
        %p128 = pneg %p58
        %p129 = pneg %p55
        %p130 = pneg %p84
        %p131 = pneg %p81
        %s132 = sand.u32 %s71, 1
        %s133 = scalar_lea.sflag [#allocation3], %s132
        %s134 = sand.u32 %s71, 1
        %s135 = smul.addr %s134, 8
        %s136 = scalar_lea.vmem [#allocation2], %s135
        %p137 = scmp.lt.s32.totalorder %s16, 1
        %s138 = scalar_select %p137, %s16, 1
        %s139 = smul.addr %s138, 36
        %s140 = smul.addr %s139, 8
        %s141 = scalar_lea.vmem %s0, %s140
        %v142 = vld [vmem:[%s141] sm:$0xff]
        %v143 = vld [vmem:[%s141 + $0x20] sm:$0xff]
        %v144 = vld [vmem:[%s141 + $0x40] sm:$0xff]
        %v145 = vld [vmem:[%s141 + $0x60] sm:$0xff]
        %v146 = vld [vmem:[%s141 + $0x80] sm:$0xff]
        %v147 = vld [vmem:[%s141 + $0xa0] sm:$0xff]
        %v148 = vld [vmem:[%s141 + $0xc0] sm:$0xff]
        %v149 = vld [vmem:[%s141 + $0xe0] sm:$0xff]
        %v150 = vld [vmem:[%s1] sm:$0xff]
        %v151 = vld [vmem:[%s141 + $0x1] sm:$0xff]
        %v152 = vld [vmem:[%s141 + $0x21] sm:$0xff]
        %v153 = vld [vmem:[%s141 + $0x41] sm:$0xff]
        %v154 = vld [vmem:[%s141 + $0x61] sm:$0xff]
        %v155 = vld [vmem:[%s141 + $0x81] sm:$0xff]
        %v156 = vld [vmem:[%s141 + $0xa1] sm:$0xff]
        %v157 = vld [vmem:[%s141 + $0xc1] sm:$0xff]
        %v158 = vld [vmem:[%s141 + $0xe1] sm:$0xff]
        %s159 = scalar_lea.vmem %s1, 8
        %v160 = vld [vmem:[%s159] sm:$0xff]
        %vm161 = vcmask 64512
        %v163 = vsel %vm161, %v160, 0
        %v166 = vsel %vm161, %v151, 0
        %v169 = vsel %vm161, %v152, 0
        %v172 = vsel %vm161, %v153, 0
        %v175 = vsel %vm161, %v154, 0
        %v178 = vsel %vm161, %v155, 0
        %v181 = vsel %vm161, %v156, 0
        %v184 = vsel %vm161, %v157, 0
        %v187 = vsel %vm161, %v158, 0
        %189 = vmatprep.subr.mxu0 0.0
        %190 = vmatpush1.xpose.msra.mxu0 %v166
        %191 = vmatprep.subr.mxu0 0.0
        %192 = vmatpush1.xpose.msra.mxu0 %v169
        %193 = vmatprep.subr.mxu0 0.0
        %194 = vmatpush1.xpose.msra.mxu0 %v172
        %195 = vmatprep.subr.mxu0 0.0
        %196 = vmatpush1.xpose.msra.mxu0 %v175
        %197 = vmatprep.subr.mxu0 0.0
        %198 = vmatpush1.xpose.msra.mxu0 %v178
        %199 = vmatprep.subr.mxu0 0.0
        %200 = vmatpush1.xpose.msra.mxu0 %v181
        %201 = vmatprep.subr.mxu0 0.0
        %202 = vmatpush1.xpose.msra.mxu0 %v184
        %203 = vmatprep.subr.mxu0 0.0
        %204 = vmatpush1.xpose.msra.mxu0 %v187
        %205 = vmatprep.subr.mxu0 0.0
        %206 = vmatpush1.xpose.msra.mxu0 0.0
        %207 = vmatprep.subr.mxu0 0.0
        %208 = vmatpush1.xpose.msra.mxu0 0.0
        %209 = vmatprep.subr.mxu0 0.0
        %210 = vmatpush1.xpose.msra.mxu0 0.0
        %211 = vmatprep.subr.mxu0 0.0
        %212 = vmatpush1.xpose.msra.mxu0 0.0
        %213 = vmatprep.subr.mxu0 0.0
        %214 = vmatpush1.xpose.msra.mxu0 0.0
        %215 = vmatprep.subr.mxu0 0.0
        %216 = vmatpush1.xpose.msra.mxu0 0.0
        %217 = vmatprep.subr.mxu0 0.0
        %218 = vmatpush1.xpose.msra.mxu0 0.0
        %219 = vmatprep.subr.mxu0 0.0
        %220 = vmatpush1.xpose.msra.mxu0 0.0
        %221 = vmatprep.subr.mxu0 0.0
        %222 = vmatpush1.xpose.msra.mxu0 0.0
        %223 = vmatprep.subr.mxu0 0.0
        %224 = vmatpush1.xpose.msra.mxu0 0.0
        %225 = vmatprep.subr.mxu0 0.0
        %226 = vmatpush1.xpose.msra.mxu0 0.0
        %227 = vmatprep.subr.mxu0 0.0
        %228 = vmatpush1.xpose.msra.mxu0 0.0
        %229 = vmatprep.subr.mxu0 0.0
        %230 = vmatpush1.xpose.msra.mxu0 0.0
        %231 = vmatprep.subr.mxu0 0.0
        %232 = vmatpush1.xpose.msra.mxu0 0.0
        %233 = vmatprep.subr.mxu0 0.0
        %234 = vmatpush1.xpose.msra.mxu0 0.0
        %235 = vmatprep.subr.mxu0 0.0
        %236 = vmatpush1.xpose.msra.mxu0 0.0
        %237 = vmatprep.subr.mxu0 0.0
        %238 = vmatpush1.xpose.msra.mxu0 0.0
        %239 = vmatprep.subr.mxu0 0.0
        %240 = vmatpush1.xpose.msra.mxu0 0.0
        %241 = vmatprep.subr.mxu0 0.0
        %242 = vmatpush1.xpose.msra.mxu0 0.0
        %243 = vmatprep.subr.mxu0 0.0
        %244 = vmatpush1.xpose.msra.mxu0 0.0
        %245 = vmatprep.subr.mxu0 0.0
        %246 = vmatpush1.xpose.msra.mxu0 0.0
        %247 = vmatprep.subr.mxu0 0.0
        %248 = vmatpush1.xpose.msra.mxu0 0.0
        %249 = vmatprep.subr.mxu0 0.0
        %250 = vmatpush1.xpose.msra.mxu0 0.0
        %251 = vmatprep.subr.mxu0 0.0
        %252 = vmatpush1.xpose.msra.mxu0 0.0
        %253 = vmatprep.mubr.f32.mxu0 0.0
        %254 = vmatmul.mubr.f32.gmra.mrb[0].mxu0 %v163
        %v255 = vpop.f32.mrb[0].mxu0
        %v256 = vadd.f32 0.0, %v255
        %v257 = vpop.f32.mrb[0].mxu0
        %258 = vdwg.mxu0
        %v260 = vsel %vm161, %v150, 0
        %v263 = vsel %vm161, %v142, 0
        %v266 = vsel %vm161, %v143, 0
        %v269 = vsel %vm161, %v144, 0
        %v272 = vsel %vm161, %v145, 0
        %v275 = vsel %vm161, %v146, 0
        %v278 = vsel %vm161, %v147, 0
        %v281 = vsel %vm161, %v148, 0
        %v284 = vsel %vm161, %v149, 0
        %286 = vmatprep.subr.mxu0 0.0
        %287 = vmatpush1.xpose.msra.mxu0 %v263
        %288 = vmatprep.subr.mxu0 0.0
        %289 = vmatpush1.xpose.msra.mxu0 %v266
        %290 = vmatprep.subr.mxu0 0.0
        %291 = vmatpush1.xpose.msra.mxu0 %v269
        %292 = vmatprep.subr.mxu0 0.0
        %293 = vmatpush1.xpose.msra.mxu0 %v272
        %294 = vmatprep.subr.mxu0 0.0
        %295 = vmatpush1.xpose.msra.mxu0 %v275
        %296 = vmatprep.subr.mxu0 0.0
        %297 = vmatpush1.xpose.msra.mxu0 %v278
        %298 = vmatprep.subr.mxu0 0.0
        %299 = vmatpush1.xpose.msra.mxu0 %v281
        %300 = vmatprep.subr.mxu0 0.0
        %301 = vmatpush1.xpose.msra.mxu0 %v284
        %302 = vmatprep.subr.mxu0 0.0
        %303 = vmatpush1.xpose.msra.mxu0 0.0
        %304 = vmatprep.subr.mxu0 0.0
        %305 = vmatpush1.xpose.msra.mxu0 0.0
        %306 = vmatprep.subr.mxu0 0.0
        %307 = vmatpush1.xpose.msra.mxu0 0.0
        %308 = vmatprep.subr.mxu0 0.0
        %309 = vmatpush1.xpose.msra.mxu0 0.0
        %310 = vmatprep.subr.mxu0 0.0
        %311 = vmatpush1.xpose.msra.mxu0 0.0
        %312 = vmatprep.subr.mxu0 0.0
        %313 = vmatpush1.xpose.msra.mxu0 0.0
        %314 = vmatprep.subr.mxu0 0.0
        %315 = vmatpush1.xpose.msra.mxu0 0.0
        %316 = vmatprep.subr.mxu0 0.0
        %317 = vmatpush1.xpose.msra.mxu0 0.0
        %318 = vmatprep.subr.mxu0 0.0
        %319 = vmatpush1.xpose.msra.mxu0 0.0
        %320 = vmatprep.subr.mxu0 0.0
        %321 = vmatpush1.xpose.msra.mxu0 0.0
        %322 = vmatprep.subr.mxu0 0.0
        %323 = vmatpush1.xpose.msra.mxu0 0.0
        %324 = vmatprep.subr.mxu0 0.0
        %325 = vmatpush1.xpose.msra.mxu0 0.0
        %326 = vmatprep.subr.mxu0 0.0
        %327 = vmatpush1.xpose.msra.mxu0 0.0
        %328 = vmatprep.subr.mxu0 0.0
        %329 = vmatpush1.xpose.msra.mxu0 0.0
        %330 = vmatprep.subr.mxu0 0.0
        %331 = vmatpush1.xpose.msra.mxu0 0.0
        %332 = vmatprep.subr.mxu0 0.0
        %333 = vmatpush1.xpose.msra.mxu0 0.0
        %334 = vmatprep.subr.mxu0 0.0
        %335 = vmatpush1.xpose.msra.mxu0 0.0
        %336 = vmatprep.subr.mxu0 0.0
        %337 = vmatpush1.xpose.msra.mxu0 0.0
        %338 = vmatprep.subr.mxu0 0.0
        %339 = vmatpush1.xpose.msra.mxu0 0.0
        %340 = vmatprep.subr.mxu0 0.0
        %341 = vmatpush1.xpose.msra.mxu0 0.0
        %342 = vmatprep.subr.mxu0 0.0
        %343 = vmatpush1.xpose.msra.mxu0 0.0
        %344 = vmatprep.subr.mxu0 0.0
        %345 = vmatpush1.xpose.msra.mxu0 0.0
        %346 = vmatprep.subr.mxu0 0.0
        %347 = vmatpush1.xpose.msra.mxu0 0.0
        %348 = vmatprep.subr.mxu0 0.0
        %349 = vmatpush1.xpose.msra.mxu0 0.0
        %350 = vmatprep.mubr.f32.mxu0 0.0
        %351 = vmatmul.mubr.f32.gmra.mrb[0].mxu0 %v260
        %v352 = vpop.f32.mrb[0].mxu0
        %v353 = vadd.f32 %v256, %v352
        %v354 = vpop.f32.mrb[0].mxu0
        %355 = vdwg.mxu0
        %s356 = scalar_lea.vmem %s141, 16
        %v357 = vld [vmem:[%s356] sm:$0xff]
        %v358 = vld [vmem:[%s356 + $0x20] sm:$0xff]
        %v359 = vld [vmem:[%s356 + $0x40] sm:$0xff]
        %v360 = vld [vmem:[%s356 + $0x60] sm:$0xff]
        %v361 = vld [vmem:[%s356 + $0x80] sm:$0xff]
        %v362 = vld [vmem:[%s356 + $0xa0] sm:$0xff]
        %v363 = vld [vmem:[%s356 + $0xc0] sm:$0xff]
        %v364 = vld [vmem:[%s356 + $0xe0] sm:$0xff]
        %s365 = scalar_lea.vmem %s1, 16
        %v366 = vld [vmem:[%s365] sm:$0xff]
        %v368 = vsel %vm161, %v366, 0
        %v371 = vsel %vm161, %v357, 0
        %v374 = vsel %vm161, %v358, 0
        %v377 = vsel %vm161, %v359, 0
        %v380 = vsel %vm161, %v360, 0
        %v383 = vsel %vm161, %v361, 0
        %v386 = vsel %vm161, %v362, 0
        %v389 = vsel %vm161, %v363, 0
        %v392 = vsel %vm161, %v364, 0
        %394 = vmatprep.subr.mxu0 0.0
        %395 = vmatpush1.xpose.msra.mxu0 %v371
        %396 = vmatprep.subr.mxu0 0.0
        %397 = vmatpush1.xpose.msra.mxu0 %v374
        %398 = vmatprep.subr.mxu0 0.0
        %399 = vmatpush1.xpose.msra.mxu0 %v377
        %400 = vmatprep.subr.mxu0 0.0
        %401 = vmatpush1.xpose.msra.mxu0 %v380
        %402 = vmatprep.subr.mxu0 0.0
        %403 = vmatpush1.xpose.msra.mxu0 %v383
        %404 = vmatprep.subr.mxu0 0.0
        %405 = vmatpush1.xpose.msra.mxu0 %v386
        %406 = vmatprep.subr.mxu0 0.0
        %407 = vmatpush1.xpose.msra.mxu0 %v389
        %408 = vmatprep.subr.mxu0 0.0
        %409 = vmatpush1.xpose.msra.mxu0 %v392
        %410 = vmatprep.subr.mxu0 0.0
        %411 = vmatpush1.xpose.msra.mxu0 0.0
        %412 = vmatprep.subr.mxu0 0.0
        %413 = vmatpush1.xpose.msra.mxu0 0.0
        %414 = vmatprep.subr.mxu0 0.0
        %415 = vmatpush1.xpose.msra.mxu0 0.0
        %416 = vmatprep.subr.mxu0 0.0
        %417 = vmatpush1.xpose.msra.mxu0 0.0
        %418 = vmatprep.subr.mxu0 0.0
        %419 = vmatpush1.xpose.msra.mxu0 0.0
        %420 = vmatprep.subr.mxu0 0.0
        %421 = vmatpush1.xpose.msra.mxu0 0.0
        %422 = vmatprep.subr.mxu0 0.0
        %423 = vmatpush1.xpose.msra.mxu0 0.0
        %424 = vmatprep.subr.mxu0 0.0
        %425 = vmatpush1.xpose.msra.mxu0 0.0
        %426 = vmatprep.subr.mxu0 0.0
        %427 = vmatpush1.xpose.msra.mxu0 0.0
        %428 = vmatprep.subr.mxu0 0.0
        %429 = vmatpush1.xpose.msra.mxu0 0.0
        %430 = vmatprep.subr.mxu0 0.0
        %431 = vmatpush1.xpose.msra.mxu0 0.0
        %432 = vmatprep.subr.mxu0 0.0
        %433 = vmatpush1.xpose.msra.mxu0 0.0
        %434 = vmatprep.subr.mxu0 0.0
        %435 = vmatpush1.xpose.msra.mxu0 0.0
        %436 = vmatprep.subr.mxu0 0.0
        %437 = vmatpush1.xpose.msra.mxu0 0.0
        %438 = vmatprep.subr.mxu0 0.0
        %439 = vmatpush1.xpose.msra.mxu0 0.0
        %440 = vmatprep.subr.mxu0 0.0
        %441 = vmatpush1.xpose.msra.mxu0 0.0
        %442 = vmatprep.subr.mxu0 0.0
        %443 = vmatpush1.xpose.msra.mxu0 0.0
        %444 = vmatprep.subr.mxu0 0.0
        %445 = vmatpush1.xpose.msra.mxu0 0.0
        %446 = vmatprep.subr.mxu0 0.0
        %447 = vmatpush1.xpose.msra.mxu0 0.0
        %448 = vmatprep.subr.mxu0 0.0
        %449 = vmatpush1.xpose.msra.mxu0 0.0
        %450 = vmatprep.subr.mxu0 0.0
        %451 = vmatpush1.xpose.msra.mxu0 0.0
        %452 = vmatprep.subr.mxu0 0.0
        %453 = vmatpush1.xpose.msra.mxu0 0.0
        %454 = vmatprep.subr.mxu0 0.0
        %455 = vmatpush1.xpose.msra.mxu0 0.0
        %456 = vmatprep.subr.mxu0 0.0
        %457 = vmatpush1.xpose.msra.mxu0 0.0
        %458 = vmatprep.mubr.f32.mxu0 0.0
        %459 = vmatmul.mubr.f32.gmra.mrb[0].mxu0 %v368
        %v460 = vpop.f32.mrb[0].mxu0
        %v461 = vadd.f32 0.0, %v460
        %v462 = vpop.f32.mrb[0].mxu0
        %463 = vdwg.mxu0
        %v464 = vadd.f32 %v353, %v461
        %v465 = vld [vmem:[%s356 + $0x1] sm:$0xff]
        %v466 = vld [vmem:[%s356 + $0x21] sm:$0xff]
        %v467 = vld [vmem:[%s356 + $0x41] sm:$0xff]
        %v468 = vld [vmem:[%s356 + $0x61] sm:$0xff]
        %v469 = vld [vmem:[%s356 + $0x81] sm:$0xff]
        %v470 = vld [vmem:[%s356 + $0xa1] sm:$0xff]
        %v471 = vld [vmem:[%s356 + $0xc1] sm:$0xff]
        %v472 = vld [vmem:[%s356 + $0xe1] sm:$0xff]
        %s473 = scalar_lea.vmem %s1, 24
        %v474 = vld [vmem:[%s473] sm:$0xff]
        %v476 = vsel %vm161, %v474, 0
        %v479 = vsel %vm161, %v465, 0
        %v482 = vsel %vm161, %v466, 0
        %v485 = vsel %vm161, %v467, 0
        %v488 = vsel %vm161, %v468, 0
        %v491 = vsel %vm161, %v469, 0
        %v494 = vsel %vm161, %v470, 0
        %v497 = vsel %vm161, %v471, 0
        %v500 = vsel %vm161, %v472, 0
        %502 = vmatprep.subr.mxu0 0.0
        %503 = vmatpush1.xpose.msra.mxu0 %v479
        %504 = vmatprep.subr.mxu0 0.0
        %505 = vmatpush1.xpose.msra.mxu0 %v482
        %506 = vmatprep.subr.mxu0 0.0
        %507 = vmatpush1.xpose.msra.mxu0 %v485
        %508 = vmatprep.subr.mxu0 0.0
        %509 = vmatpush1.xpose.msra.mxu0 %v488
        %510 = vmatprep.subr.mxu0 0.0
        %511 = vmatpush1.xpose.msra.mxu0 %v491
        %512 = vmatprep.subr.mxu0 0.0
        %513 = vmatpush1.xpose.msra.mxu0 %v494
        %514 = vmatprep.subr.mxu0 0.0
        %515 = vmatpush1.xpose.msra.mxu0 %v497
        %516 = vmatprep.subr.mxu0 0.0
        %517 = vmatpush1.xpose.msra.mxu0 %v500
        %518 = vmatprep.subr.mxu0 0.0
        %519 = vmatpush1.xpose.msra.mxu0 0.0
        %520 = vmatprep.subr.mxu0 0.0
        %521 = vmatpush1.xpose.msra.mxu0 0.0
        %522 = vmatprep.subr.mxu0 0.0
        %523 = vmatpush1.xpose.msra.mxu0 0.0
        %524 = vmatprep.subr.mxu0 0.0
        %525 = vmatpush1.xpose.msra.mxu0 0.0
        %526 = vmatprep.subr.mxu0 0.0
        %527 = vmatpush1.xpose.msra.mxu0 0.0
        %528 = vmatprep.subr.mxu0 0.0
        %529 = vmatpush1.xpose.msra.mxu0 0.0
        %530 = vmatprep.subr.mxu0 0.0
        %531 = vmatpush1.xpose.msra.mxu0 0.0
        %532 = vmatprep.subr.mxu0 0.0
        %533 = vmatpush1.xpose.msra.mxu0 0.0
        %534 = vmatprep.subr.mxu0 0.0
        %535 = vmatpush1.xpose.msra.mxu0 0.0
        %536 = vmatprep.subr.mxu0 0.0
        %537 = vmatpush1.xpose.msra.mxu0 0.0
        %538 = vmatprep.subr.mxu0 0.0
        %539 = vmatpush1.xpose.msra.mxu0 0.0
        %540 = vmatprep.subr.mxu0 0.0
        %541 = vmatpush1.xpose.msra.mxu0 0.0
        %542 = vmatprep.subr.mxu0 0.0
        %543 = vmatpush1.xpose.msra.mxu0 0.0
        %544 = vmatprep.subr.mxu0 0.0
        %545 = vmatpush1.xpose.msra.mxu0 0.0
        %546 = vmatprep.subr.mxu0 0.0
        %547 = vmatpush1.xpose.msra.mxu0 0.0
        %548 = vmatprep.subr.mxu0 0.0
        %549 = vmatpush1.xpose.msra.mxu0 0.0
        %550 = vmatprep.subr.mxu0 0.0
        %551 = vmatpush1.xpose.msra.mxu0 0.0
        %552 = vmatprep.subr.mxu0 0.0
        %553 = vmatpush1.xpose.msra.mxu0 0.0
        %554 = vmatprep.subr.mxu0 0.0
        %555 = vmatpush1.xpose.msra.mxu0 0.0
        %556 = vmatprep.subr.mxu0 0.0
        %557 = vmatpush1.xpose.msra.mxu0 0.0
        %558 = vmatprep.subr.mxu0 0.0
        %559 = vmatpush1.xpose.msra.mxu0 0.0
        %560 = vmatprep.subr.mxu0 0.0
        %561 = vmatpush1.xpose.msra.mxu0 0.0
        %562 = vmatprep.subr.mxu0 0.0
        %563 = vmatpush1.xpose.msra.mxu0 0.0
        %564 = vmatprep.subr.mxu0 0.0
        %565 = vmatpush1.xpose.msra.mxu0 0.0
        %566 = vmatprep.mubr.f32.mxu0 0.0
        %567 = vmatmul.mubr.f32.gmra.mrb[0].mxu0 %v476
        %v568 = vpop.f32.mrb[0].mxu0
        %v569 = vadd.f32 0.0, %v568
        %v570 = vpop.f32.mrb[0].mxu0
        %571 = vdwg.mxu0
        %v572 = vadd.f32 %v464, %v569
        %s573 = scalar_lea.vmem %s141, 32
        %v574 = vld [vmem:[%s573] sm:$0xff]
        %v575 = vld [vmem:[%s573 + $0x20] sm:$0xff]
        %v576 = vld [vmem:[%s573 + $0x40] sm:$0xff]
        %v577 = vld [vmem:[%s573 + $0x60] sm:$0xff]
        %v578 = vld [vmem:[%s573 + $0x80] sm:$0xff]
        %v579 = vld [vmem:[%s573 + $0xa0] sm:$0xff]
        %v580 = vld [vmem:[%s573 + $0xc0] sm:$0xff]
        %v581 = vld [vmem:[%s573 + $0xe0] sm:$0xff]
        %s582 = scalar_lea.vmem %s1, 32
        %v583 = vld [vmem:[%s582] sm:$0xff]
        %v585 = vsel %vm161, %v583, 0
        %v588 = vsel %vm161, %v574, 0
        %v591 = vsel %vm161, %v575, 0
        %v594 = vsel %vm161, %v576, 0
        %v597 = vsel %vm161, %v577, 0
        %v600 = vsel %vm161, %v578, 0
        %v603 = vsel %vm161, %v579, 0
        %v606 = vsel %vm161, %v580, 0
        %v609 = vsel %vm161, %v581, 0
        %611 = vmatprep.subr.mxu0 0.0
        %612 = vmatpush1.xpose.msra.mxu0 %v588
        %613 = vmatprep.subr.mxu0 0.0
        %614 = vmatpush1.xpose.msra.mxu0 %v591
        %615 = vmatprep.subr.mxu0 0.0
        %616 = vmatpush1.xpose.msra.mxu0 %v594
        %617 = vmatprep.subr.mxu0 0.0
        %618 = vmatpush1.xpose.msra.mxu0 %v597
        %619 = vmatprep.subr.mxu0 0.0
        %620 = vmatpush1.xpose.msra.mxu0 %v600
        %621 = vmatprep.subr.mxu0 0.0
        %622 = vmatpush1.xpose.msra.mxu0 %v603
        %623 = vmatprep.subr.mxu0 0.0
        %624 = vmatpush1.xpose.msra.mxu0 %v606
        %625 = vmatprep.subr.mxu0 0.0
        %626 = vmatpush1.xpose.msra.mxu0 %v609
        %627 = vmatprep.subr.mxu0 0.0
        %628 = vmatpush1.xpose.msra.mxu0 0.0
        %629 = vmatprep.subr.mxu0 0.0
        %630 = vmatpush1.xpose.msra.mxu0 0.0
        %631 = vmatprep.subr.mxu0 0.0
        %632 = vmatpush1.xpose.msra.mxu0 0.0
        %633 = vmatprep.subr.mxu0 0.0
        %634 = vmatpush1.xpose.msra.mxu0 0.0
        %635 = vmatprep.subr.mxu0 0.0
        %636 = vmatpush1.xpose.msra.mxu0 0.0
        %637 = vmatprep.subr.mxu0 0.0
        %638 = vmatpush1.xpose.msra.mxu0 0.0
        %639 = vmatprep.subr.mxu0 0.0
        %640 = vmatpush1.xpose.msra.mxu0 0.0
        %641 = vmatprep.subr.mxu0 0.0
        %642 = vmatpush1.xpose.msra.mxu0 0.0
        %643 = vmatprep.subr.mxu0 0.0
        %644 = vmatpush1.xpose.msra.mxu0 0.0
        %645 = vmatprep.subr.mxu0 0.0
        %646 = vmatpush1.xpose.msra.mxu0 0.0
        %647 = vmatprep.subr.mxu0 0.0
        %648 = vmatpush1.xpose.msra.mxu0 0.0
        %649 = vmatprep.subr.mxu0 0.0
        %650 = vmatpush1.xpose.msra.mxu0 0.0
        %651 = vmatprep.subr.mxu0 0.0
        %652 = vmatpush1.xpose.msra.mxu0 0.0
        %653 = vmatprep.subr.mxu0 0.0
        %654 = vmatpush1.xpose.msra.mxu0 0.0
        %655 = vmatprep.subr.mxu0 0.0
        %656 = vmatpush1.xpose.msra.mxu0 0.0
        %657 = vmatprep.subr.mxu0 0.0
        %658 = vmatpush1.xpose.msra.mxu0 0.0
        %659 = vmatprep.subr.mxu0 0.0
        %660 = vmatpush1.xpose.msra.mxu0 0.0
        %661 = vmatprep.subr.mxu0 0.0
        %662 = vmatpush1.xpose.msra.mxu0 0.0
        %663 = vmatprep.subr.mxu0 0.0
        %664 = vmatpush1.xpose.msra.mxu0 0.0
        %665 = vmatprep.subr.mxu0 0.0
        %666 = vmatpush1.xpose.msra.mxu0 0.0
        %667 = vmatprep.subr.mxu0 0.0
        %668 = vmatpush1.xpose.msra.mxu0 0.0
        %669 = vmatprep.subr.mxu0 0.0
        %670 = vmatpush1.xpose.msra.mxu0 0.0
        %671 = vmatprep.subr.mxu0 0.0
        %672 = vmatpush1.xpose.msra.mxu0 0.0
        %673 = vmatprep.subr.mxu0 0.0
        %674 = vmatpush1.xpose.msra.mxu0 0.0
        %675 = vmatprep.mubr.f32.mxu0 0.0
        %676 = vmatmul.mubr.f32.gmra.mrb[0].mxu0 %v585
        %v677 = vpop.f32.mrb[0].mxu0
        %v678 = vadd.f32 0.0, %v677
        %v679 = vpop.f32.mrb[0].mxu0
        %680 = vdwg.mxu0
        %v681 = vadd.f32 %v572, %v678
        %v682 = vld [vmem:[%s573 + $0x1] sm:$0xff]
        %v683 = vld [vmem:[%s573 + $0x21] sm:$0xff]
        %v684 = vld [vmem:[%s573 + $0x41] sm:$0xff]
        %v685 = vld [vmem:[%s573 + $0x61] sm:$0xff]
        %v686 = vld [vmem:[%s573 + $0x81] sm:$0xff]
        %v687 = vld [vmem:[%s573 + $0xa1] sm:$0xff]
        %v688 = vld [vmem:[%s573 + $0xc1] sm:$0xff]
        %v689 = vld [vmem:[%s573 + $0xe1] sm:$0xff]
        %s690 = scalar_lea.vmem %s1, 40
        %v691 = vld [vmem:[%s690] sm:$0xff]
        %v693 = vsel %vm161, %v691, 0
        %v696 = vsel %vm161, %v682, 0
        %v699 = vsel %vm161, %v683, 0
        %v702 = vsel %vm161, %v684, 0
        %v705 = vsel %vm161, %v685, 0
        %v708 = vsel %vm161, %v686, 0
        %v711 = vsel %vm161, %v687, 0
        %v714 = vsel %vm161, %v688, 0
        %v717 = vsel %vm161, %v689, 0
        %719 = vmatprep.subr.mxu0 0.0
        %720 = vmatpush1.xpose.msra.mxu0 %v696
        %721 = vmatprep.subr.mxu0 0.0
        %722 = vmatpush1.xpose.msra.mxu0 %v699
        %723 = vmatprep.subr.mxu0 0.0
        %724 = vmatpush1.xpose.msra.mxu0 %v702
        %725 = vmatprep.subr.mxu0 0.0
        %726 = vmatpush1.xpose.msra.mxu0 %v705
        %727 = vmatprep.subr.mxu0 0.0
        %728 = vmatpush1.xpose.msra.mxu0 %v708
        %729 = vmatprep.subr.mxu0 0.0
        %730 = vmatpush1.xpose.msra.mxu0 %v711
        %731 = vmatprep.subr.mxu0 0.0
        %732 = vmatpush1.xpose.msra.mxu0 %v714
        %733 = vmatprep.subr.mxu0 0.0
        %734 = vmatpush1.xpose.msra.mxu0 %v717
        %735 = vmatprep.subr.mxu0 0.0
        %736 = vmatpush1.xpose.msra.mxu0 0.0
        %737 = vmatprep.subr.mxu0 0.0
        %738 = vmatpush1.xpose.msra.mxu0 0.0
        %739 = vmatprep.subr.mxu0 0.0
        %740 = vmatpush1.xpose.msra.mxu0 0.0
        %741 = vmatprep.subr.mxu0 0.0
        %742 = vmatpush1.xpose.msra.mxu0 0.0
        %743 = vmatprep.subr.mxu0 0.0
        %744 = vmatpush1.xpose.msra.mxu0 0.0
        %745 = vmatprep.subr.mxu0 0.0
        %746 = vmatpush1.xpose.msra.mxu0 0.0
        %747 = vmatprep.subr.mxu0 0.0
        %748 = vmatpush1.xpose.msra.mxu0 0.0
        %749 = vmatprep.subr.mxu0 0.0
        %750 = vmatpush1.xpose.msra.mxu0 0.0
        %751 = vmatprep.subr.mxu0 0.0
        %752 = vmatpush1.xpose.msra.mxu0 0.0
        %753 = vmatprep.subr.mxu0 0.0
        %754 = vmatpush1.xpose.msra.mxu0 0.0
        %755 = vmatprep.subr.mxu0 0.0
        %756 = vmatpush1.xpose.msra.mxu0 0.0
        %757 = vmatprep.subr.mxu0 0.0
        %758 = vmatpush1.xpose.msra.mxu0 0.0
        %759 = vmatprep.subr.mxu0 0.0
        %760 = vmatpush1.xpose.msra.mxu0 0.0
        %761 = vmatprep.subr.mxu0 0.0
        %762 = vmatpush1.xpose.msra.mxu0 0.0
        %763 = vmatprep.subr.mxu0 0.0
        %764 = vmatpush1.xpose.msra.mxu0 0.0
        %765 = vmatprep.subr.mxu0 0.0
        %766 = vmatpush1.xpose.msra.mxu0 0.0
        %767 = vmatprep.subr.mxu0 0.0
        %768 = vmatpush1.xpose.msra.mxu0 0.0
        %769 = vmatprep.subr.mxu0 0.0
        %770 = vmatpush1.xpose.msra.mxu0 0.0
        %771 = vmatprep.subr.mxu0 0.0
        %772 = vmatpush1.xpose.msra.mxu0 0.0
        %773 = vmatprep.subr.mxu0 0.0
        %774 = vmatpush1.xpose.msra.mxu0 0.0
        %775 = vmatprep.subr.mxu0 0.0
        %776 = vmatpush1.xpose.msra.mxu0 0.0
        %777 = vmatprep.subr.mxu0 0.0
        %778 = vmatpush1.xpose.msra.mxu0 0.0
        %779 = vmatprep.subr.mxu0 0.0
        %780 = vmatpush1.xpose.msra.mxu0 0.0
        %781 = vmatprep.subr.mxu0 0.0
        %782 = vmatpush1.xpose.msra.mxu0 0.0
        %783 = vmatprep.mubr.f32.mxu0 0.0
        %784 = vmatmul.mubr.f32.gmra.mrb[0].mxu0 %v693
        %v785 = vpop.f32.mrb[0].mxu0
        %v786 = vadd.f32 0.0, %v785
        %v787 = vpop.f32.mrb[0].mxu0
        %788 = vdwg.mxu0
        %v789 = vadd.f32 %v681, %v786
        %s790 = scalar_lea.vmem %s141, 48
        %v791 = vld [vmem:[%s790] sm:$0xff]
        %v792 = vld [vmem:[%s790 + $0x20] sm:$0xff]
        %v793 = vld [vmem:[%s790 + $0x40] sm:$0xff]
        %v794 = vld [vmem:[%s790 + $0x60] sm:$0xff]
        %v795 = vld [vmem:[%s790 + $0x80] sm:$0xff]
        %v796 = vld [vmem:[%s790 + $0xa0] sm:$0xff]
        %v797 = vld [vmem:[%s790 + $0xc0] sm:$0xff]
        %v798 = vld [vmem:[%s790 + $0xe0] sm:$0xff]
        %s799 = scalar_lea.vmem %s1, 48
        %v800 = vld [vmem:[%s799] sm:$0xff]
        %v802 = vsel %vm161, %v800, 0
        %v805 = vsel %vm161, %v791, 0
        %v808 = vsel %vm161, %v792, 0
        %v811 = vsel %vm161, %v793, 0
        %v814 = vsel %vm161, %v794, 0
        %v817 = vsel %vm161, %v795, 0
        %v820 = vsel %vm161, %v796, 0
        %v823 = vsel %vm161, %v797, 0
        %v826 = vsel %vm161, %v798, 0
        %828 = vmatprep.subr.mxu0 0.0
        %829 = vmatpush1.xpose.msra.mxu0 %v805
        %830 = vmatprep.subr.mxu0 0.0
        %831 = vmatpush1.xpose.msra.mxu0 %v808
        %832 = vmatprep.subr.mxu0 0.0
        %833 = vmatpush1.xpose.msra.mxu0 %v811
        %834 = vmatprep.subr.mxu0 0.0
        %835 = vmatpush1.xpose.msra.mxu0 %v814
        %836 = vmatprep.subr.mxu0 0.0
        %837 = vmatpush1.xpose.msra.mxu0 %v817
        %838 = vmatprep.subr.mxu0 0.0
        %839 = vmatpush1.xpose.msra.mxu0 %v820
        %840 = vmatprep.subr.mxu0 0.0
        %841 = vmatpush1.xpose.msra.mxu0 %v823
        %842 = vmatprep.subr.mxu0 0.0
        %843 = vmatpush1.xpose.msra.mxu0 %v826
        %844 = vmatprep.subr.mxu0 0.0
        %845 = vmatpush1.xpose.msra.mxu0 0.0
        %846 = vmatprep.subr.mxu0 0.0
        %847 = vmatpush1.xpose.msra.mxu0 0.0
        %848 = vmatprep.subr.mxu0 0.0
        %849 = vmatpush1.xpose.msra.mxu0 0.0
        %850 = vmatprep.subr.mxu0 0.0
        %851 = vmatpush1.xpose.msra.mxu0 0.0
        %852 = vmatprep.subr.mxu0 0.0
        %853 = vmatpush1.xpose.msra.mxu0 0.0
        %854 = vmatprep.subr.mxu0 0.0
        %855 = vmatpush1.xpose.msra.mxu0 0.0
        %856 = vmatprep.subr.mxu0 0.0
        %857 = vmatpush1.xpose.msra.mxu0 0.0
        %858 = vmatprep.subr.mxu0 0.0
        %859 = vmatpush1.xpose.msra.mxu0 0.0
        %860 = vmatprep.subr.mxu0 0.0
        %861 = vmatpush1.xpose.msra.mxu0 0.0
        %862 = vmatprep.subr.mxu0 0.0
        %863 = vmatpush1.xpose.msra.mxu0 0.0
        %864 = vmatprep.subr.mxu0 0.0
        %865 = vmatpush1.xpose.msra.mxu0 0.0
        %866 = vmatprep.subr.mxu0 0.0
        %867 = vmatpush1.xpose.msra.mxu0 0.0
        %868 = vmatprep.subr.mxu0 0.0
        %869 = vmatpush1.xpose.msra.mxu0 0.0
        %870 = vmatprep.subr.mxu0 0.0
        %871 = vmatpush1.xpose.msra.mxu0 0.0
        %872 = vmatprep.subr.mxu0 0.0
        %873 = vmatpush1.xpose.msra.mxu0 0.0
        %874 = vmatprep.subr.mxu0 0.0
        %875 = vmatpush1.xpose.msra.mxu0 0.0
        %876 = vmatprep.subr.mxu0 0.0
        %877 = vmatpush1.xpose.msra.mxu0 0.0
        %878 = vmatprep.subr.mxu0 0.0
        %879 = vmatpush1.xpose.msra.mxu0 0.0
        %880 = vmatprep.subr.mxu0 0.0
        %881 = vmatpush1.xpose.msra.mxu0 0.0
        %882 = vmatprep.subr.mxu0 0.0
        %883 = vmatpush1.xpose.msra.mxu0 0.0
        %884 = vmatprep.subr.mxu0 0.0
        %885 = vmatpush1.xpose.msra.mxu0 0.0
        %886 = vmatprep.subr.mxu0 0.0
        %887 = vmatpush1.xpose.msra.mxu0 0.0
        %888 = vmatprep.subr.mxu0 0.0
        %889 = vmatpush1.xpose.msra.mxu0 0.0
        %890 = vmatprep.subr.mxu0 0.0
        %891 = vmatpush1.xpose.msra.mxu0 0.0
        %892 = vmatprep.mubr.f32.mxu0 0.0
        %893 = vmatmul.mubr.f32.gmra.mrb[0].mxu0 %v802
        %v894 = vpop.f32.mrb[0].mxu0
        %v895 = vadd.f32 0.0, %v894
        %v896 = vpop.f32.mrb[0].mxu0
        %897 = vdwg.mxu0
        %v898 = vadd.f32 %v789, %v895
        %v899 = vld [vmem:[%s790 + $0x1] sm:$0xff]
        %v900 = vld [vmem:[%s790 + $0x21] sm:$0xff]
        %v901 = vld [vmem:[%s790 + $0x41] sm:$0xff]
        %v902 = vld [vmem:[%s790 + $0x61] sm:$0xff]
        %v903 = vld [vmem:[%s790 + $0x81] sm:$0xff]
        %v904 = vld [vmem:[%s790 + $0xa1] sm:$0xff]
        %v905 = vld [vmem:[%s790 + $0xc1] sm:$0xff]
        %v906 = vld [vmem:[%s790 + $0xe1] sm:$0xff]
        %s907 = scalar_lea.vmem %s1, 56
        %v908 = vld [vmem:[%s907] sm:$0xff]
        %v910 = vsel %vm161, %v908, 0
        %v913 = vsel %vm161, %v899, 0
        %v916 = vsel %vm161, %v900, 0
        %v919 = vsel %vm161, %v901, 0
        %v922 = vsel %vm161, %v902, 0
        %v925 = vsel %vm161, %v903, 0
        %v928 = vsel %vm161, %v904, 0
        %v931 = vsel %vm161, %v905, 0
        %v934 = vsel %vm161, %v906, 0
        %936 = vmatprep.subr.mxu0 0.0
        %937 = vmatpush1.xpose.msra.mxu0 %v913
        %938 = vmatprep.subr.mxu0 0.0
        %939 = vmatpush1.xpose.msra.mxu0 %v916
        %940 = vmatprep.subr.mxu0 0.0
        %941 = vmatpush1.xpose.msra.mxu0 %v919
        %942 = vmatprep.subr.mxu0 0.0
        %943 = vmatpush1.xpose.msra.mxu0 %v922
        %944 = vmatprep.subr.mxu0 0.0
        %945 = vmatpush1.xpose.msra.mxu0 %v925
        %946 = vmatprep.subr.mxu0 0.0
        %947 = vmatpush1.xpose.msra.mxu0 %v928
        %948 = vmatprep.subr.mxu0 0.0
        %949 = vmatpush1.xpose.msra.mxu0 %v931
        %950 = vmatprep.subr.mxu0 0.0
        %951 = vmatpush1.xpose.msra.mxu0 %v934
        %952 = vmatprep.subr.mxu0 0.0
        %953 = vmatpush1.xpose.msra.mxu0 0.0
        %954 = vmatprep.subr.mxu0 0.0
        %955 = vmatpush1.xpose.msra.mxu0 0.0
        %956 = vmatprep.subr.mxu0 0.0
        %957 = vmatpush1.xpose.msra.mxu0 0.0
        %958 = vmatprep.subr.mxu0 0.0
        %959 = vmatpush1.xpose.msra.mxu0 0.0
        %960 = vmatprep.subr.mxu0 0.0
        %961 = vmatpush1.xpose.msra.mxu0 0.0
        %962 = vmatprep.subr.mxu0 0.0
        %963 = vmatpush1.xpose.msra.mxu0 0.0
        %964 = vmatprep.subr.mxu0 0.0
        %965 = vmatpush1.xpose.msra.mxu0 0.0
        %966 = vmatprep.subr.mxu0 0.0
        %967 = vmatpush1.xpose.msra.mxu0 0.0
        %968 = vmatprep.subr.mxu0 0.0
        %969 = vmatpush1.xpose.msra.mxu0 0.0
        %970 = vmatprep.subr.mxu0 0.0
        %971 = vmatpush1.xpose.msra.mxu0 0.0
        %972 = vmatprep.subr.mxu0 0.0
        %973 = vmatpush1.xpose.msra.mxu0 0.0
        %974 = vmatprep.subr.mxu0 0.0
        %975 = vmatpush1.xpose.msra.mxu0 0.0
        %976 = vmatprep.subr.mxu0 0.0
        %977 = vmatpush1.xpose.msra.mxu0 0.0
        %978 = vmatprep.subr.mxu0 0.0
        %979 = vmatpush1.xpose.msra.mxu0 0.0
        %980 = vmatprep.subr.mxu0 0.0
        %981 = vmatpush1.xpose.msra.mxu0 0.0
        %982 = vmatprep.subr.mxu0 0.0
        %983 = vmatpush1.xpose.msra.mxu0 0.0
        %984 = vmatprep.subr.mxu0 0.0
        %985 = vmatpush1.xpose.msra.mxu0 0.0
        %986 = vmatprep.subr.mxu0 0.0
        %987 = vmatpush1.xpose.msra.mxu0 0.0
        %988 = vmatprep.subr.mxu0 0.0
        %989 = vmatpush1.xpose.msra.mxu0 0.0
        %990 = vmatprep.subr.mxu0 0.0
        %991 = vmatpush1.xpose.msra.mxu0 0.0
        %992 = vmatprep.subr.mxu0 0.0
        %993 = vmatpush1.xpose.msra.mxu0 0.0
        %994 = vmatprep.subr.mxu0 0.0
        %995 = vmatpush1.xpose.msra.mxu0 0.0
        %996 = vmatprep.subr.mxu0 0.0
        %997 = vmatpush1.xpose.msra.mxu0 0.0
        %998 = vmatprep.subr.mxu0 0.0
        %999 = vmatpush1.xpose.msra.mxu0 0.0
        %1000 = vmatprep.mubr.f32.mxu0 0.0
        %1001 = vmatmul.mubr.f32.gmra.mrb[0].mxu0 %v910
        %v1002 = vpop.f32.mrb[0].mxu0
        %v1003 = vadd.f32 0.0, %v1002
        %v1004 = vpop.f32.mrb[0].mxu0
        %1005 = vdwg.mxu0
        %v1006 = vadd.f32 %v898, %v1003
        %vm1007 = vcmask 523264
        %v1008 = vsel %vm1007, %v1006, 0.0
        %1009 = vadd.xlane.f32.xlu0 %v1008
        %v1010 = vpop.xlane.xlu0 %1009
        %v1011 = vmul.f32 %v1010, 0.015625
        %v1012 = vsub.f32 %v1006, %v1011
        %v1013 = vmul.f32 %v1012, %v1012
        %v1014 = vsel %vm1007, %v1013, 0.0
        %1015 = vadd.xlane.f32.xlu0 %v1014
        %v1016 = vpop.xlane.xlu0 %1015
        %v1017 = vmul.f32 %v1016, 0.015625
        %v1018 = vadd.f32 %v1017, 1e-05
        %v1019 = vrsqrt.pop %v1018
        %v1020 = vmul.f32 %v1012, %v1019
        %vm1021 = vcmp.gt.f32.partialorder %v1020, 0.0
        %v1022 = vmul.f32 %v1020, 0.2
        %v1023 = vsel %vm1021, %v1020, %v1022
        %1024 = vst.msk [vmem:[%s136] sm:$0xff] %vm1007, %v1023
        %s1025 = sand.u32 %s71, 1
        %s1026 = scalar_lea.sflag [#allocation3], %s1025
        %s1027 = sand.u32 %s71, 1
        %s1028 = smul.addr %s1027, 8
        %s1029 = scalar_lea.vmem [#allocation2], %s1028
        // Predicated region
        $region29: #{tpu_custom_call.1} parent=27 // pred_check
          %p1030 = pneg %p81
        $region30: #{tpu_custom_call.1} parent=27 // pred_check_branch
          %1032 = sbr.rel (%p1030) target = $region32
        $region31: #{tpu_custom_call.1} parent=27 // pred_region
          %s1034 = ssub.s32 128, 128
          %1035 = vsyncadd %s1026, %s1034
          %s1036 = smul.addr %s16, 128
          %s1037 = scalar_lea.hbm %s2, %s1036
          %s1039 = sshll.u32 %s1029, 4
          %s1040 = int_to_ptr.vmem [resolvable:$true] %s1039
          %1042 = dma.vmem_to_hbm [thread:$0]  %s1040, 128, %s1037, %s1026
        $region32: #{tpu_custom_call.1} parent=27 // pred_fallthru
          _
      $region28: #{tpu_custom_call.1} parent=5 // pred_fallthru
        _
      %p1043 = scmp.le.s32.totalorder 2, %s11
      // Predicated region
      $region33: #{tpu_custom_call.1} parent=5 // pred_check
        %p1044 = pneg %p1043
      $region34: #{tpu_custom_call.1} parent=5 // pred_check_branch
        %1046 = sbr.rel (%p1044) target = $region36
      $region35: #{tpu_custom_call.1} parent=5 // pred_region
        %s1047 = ssub.s32 %s11, 2
        // Predicated region
        $region37: #{tpu_custom_call.1} parent=35 // pred_check
          %p1048 = pneg %p87
        $region38: #{tpu_custom_call.1} parent=35 // pred_check_branch
          %1050 = sbr.rel (%p1048) target = $region40
        $region39: #{tpu_custom_call.1} parent=35 // pred_region
          %s1051 = sand.u32 %s72, 1
          %s1052 = scalar_lea.sflag [#allocation3], %s1051
          %s1053 = sand.u32 %s72, 1
          %s1054 = smul.addr %s1053, 8
          %s1055 = scalar_lea.vmem [#allocation2], %s1054
          %1056 = dma.done %s1052, 128
        $region40: #{tpu_custom_call.1} parent=35 // pred_fallthru
          _
      $region36: #{tpu_custom_call.1} parent=5 // pred_fallthru
        _
    $region6: #{tpu_custom_call.1} parent=1 // loop_footer
      %s15 = sadd.s32 1, %s11
    $region7: #{tpu_custom_call.1} parent=1 // loop_footer_branch
      %10 = sbr.rel target = $region3
    $region8: #{tpu_custom_call.1} parent=1 // loop_exit
      _
    %1057 = vsyncpa [#allocation3], 1
    %s1058 = scalar_lea.sflag [#allocation3], 1
    %1059 = vsyncpa %s1058, 1

</llo_original>
